<compile_context>
chip_gen: v5e
topology: v5e:2x2
jax: 0.10.0
libtpu: 0.0.40
codegen_flags: <defaults>
</compile_context>

<pallas_src>
import functools

import jax
import jax.numpy as jnp
from jax.experimental import pallas as pl
from jax.experimental.pallas import tpu as pltpu

BN_EPS = 1e-5
COS_EPS = 1e-8
LANE = 128
SUBLANE = 8
VMEM_LIMIT_BYTES = 48 * 1024 * 1024  # < v7x 64 MiB physical, > v5e 16 MiB scoped default


def _round_up(n, m):
    return ((n + m - 1) // m) * m


def _pad2(a, shape):
    """Zero-pad a 2-D array up to `shape`."""
    return jnp.pad(a, ((0, shape[0] - a.shape[0]), (0, shape[1] - a.shape[1])))


def _row_mask(tile_idx, tm, true_b):
    """(tm, 1) f32 mask selecting real (unpadded) batch rows of this tile."""
    rows = jax.lax.broadcasted_iota(jnp.int32, (tm, 1), 0) + tile_idx * tm
    return (rows < true_b).astype(jnp.float32)


def _accum_stats_finalize(tile_idx, h, ss_ref, gb_ref, inv_b):
    """Accumulate column sum / sum-of-squares of h across batch tiles; on the last
    tile convert (in place) to the fused BatchNorm [scale; shift]."""
    @pl.when(tile_idx == 0)
    def _():
        ss_ref[...] = jnp.zeros_like(ss_ref)

    ss_ref[0:1, :] += jnp.sum(h, axis=0, keepdims=True)
    ss_ref[1:2, :] += jnp.sum(h * h, axis=0, keepdims=True)

    @pl.when(tile_idx == pl.num_programs(0) - 1)
    def _():
        mean = ss_ref[0:1, :] * inv_b
        var = jnp.maximum(ss_ref[1:2, :] * inv_b - mean * mean, 0.0)  # biased var
        inv_std = jax.lax.rsqrt(var + BN_EPS)
        scale = gb_ref[0:1, :] * inv_std          # gamma / sqrt(var + eps)
        shift = gb_ref[1:2, :] - mean * scale     # beta - mean * scale
        ss_ref[0:1, :] = scale
        ss_ref[1:2, :] = shift


def _lin_stats_kernel(inv_b, x_ref, w_ref, gb_ref, h_ref, ss_ref):
    """h = x @ W (no bias) per batch tile + full-batch BN stats of h.
    Padded batch rows of x are zero, so they contribute 0 to the stats."""
    i = pl.program_id(0)
    h = jnp.dot(x_ref[...], w_ref[...], preferred_element_type=jnp.float32)
    h_ref[...] = h
    _accum_stats_finalize(i, h, ss_ref, gb_ref, inv_b)


def _bn_act_lin_stats_kernel(inv_b, true_b, relu,
                             h_ref, ss_in_ref, w_ref, gb_ref,
                             hout_ref, ss_out_ref):
    """a = [relu](h * scale + shift); h_out = a @ W; full-batch BN stats of h_out."""
    i = pl.program_id(0)
    a = h_ref[...] * ss_in_ref[0:1, :] + ss_in_ref[1:2, :]
    if relu:
        a = jnp.maximum(a, 0.0)
    if true_b is not None:                      # zero padded batch rows (stats safety)
        a = a * _row_mask(i, h_ref.shape[0], true_b)
    h = jnp.dot(a.astype(w_ref.dtype), w_ref[...], preferred_element_type=jnp.float32)
    hout_ref[...] = h
    _accum_stats_finalize(i, h, ss_out_ref, gb_ref, inv_b)


def _bn_act_lin_stats_emit_kernel(inv_b, true_b, relu,
                                  h_ref, ss_in_ref, w_ref, gb_ref,
                                  a_ref, hout_ref, ss_out_ref):
    """Same as above, but also emits the normalized activation `a` (the projector
    output z is needed later by the cosine loss)."""
    i = pl.program_id(0)
    a = h_ref[...] * ss_in_ref[0:1, :] + ss_in_ref[1:2, :]
    if relu:
        a = jnp.maximum(a, 0.0)
    if true_b is not None:
        a = a * _row_mask(i, h_ref.shape[0], true_b)
    a_ref[...] = a
    h = jnp.dot(a.astype(w_ref.dtype), w_ref[...], preferred_element_type=jnp.float32)
    hout_ref[...] = h
    _accum_stats_finalize(i, h, ss_out_ref, gb_ref, inv_b)


def _bn_relu_lin_bias_kernel(h_ref, ss_ref, w_ref, b_ref, out_ref):
    """p = relu(h * scale + shift) @ W + b, per batch tile (no cross-tile state)."""
    a = jnp.maximum(h_ref[...] * ss_ref[0:1, :] + ss_ref[1:2, :], 0.0)
    out_ref[...] = (jnp.dot(a.astype(w_ref.dtype), w_ref[...],
                            preferred_element_type=jnp.float32) + b_ref[...])


def _cosine_loss_kernel(inv_b, true_b, p1_ref, z2_ref, p2_ref, z1_ref, loss_ref):
    """loss = -(mean cos(p1, z2) + mean cos(p2, z1)) / 2, accumulated across tiles."""
    i = pl.program_id(0)

    @pl.when(i == 0)
    def _():
        loss_ref[...] = jnp.zeros_like(loss_ref)

    def row_cos(p, z):
        dot = jnp.sum(p * z, axis=1, keepdims=True)
        nn = (jnp.sum(p * p, axis=1, keepdims=True) *
              jnp.sum(z * z, axis=1, keepdims=True))
        return dot / jnp.maximum(jnp.sqrt(nn), COS_EPS)   # F.cosine_similarity eps

    c = row_cos(p1_ref[...], z2_ref[...]) + row_cos(p2_ref[...], z1_ref[...])
    if true_b is not None:
        c = c * _row_mask(i, p1_ref.shape[0], true_b)
    loss_ref[...] += (-0.5 * inv_b) * jnp.sum(c, axis=0, keepdims=True)


def _pad_params(params, n_in, dp, hp):
    f32 = lambda a: jnp.asarray(a, jnp.float32)
    gb = lambda g, b, n: _pad2(jnp.stack([f32(g), f32(b)]), (2, n))
    return dict(
        w1=_pad2(f32(params['w1']), (n_in, dp)), gb1=gb(params['g1'], params['b1'], dp),
        w2=_pad2(f32(params['w2']), (dp, dp)),   gb2=gb(params['g2'], params['b2'], dp),
        w3=_pad2(f32(params['w3']), (dp, dp)),   gb3=gb(params['g3'], params['b3'], dp),
        w4=_pad2(f32(params['w4']), (dp, hp)),   gb4=gb(params['g4'], params['b4'], hp),
        w5=_pad2(f32(params['w5']), (hp, dp)),
        b5=_pad2(f32(params['b5']).reshape(1, -1), (1, dp)),
    )


def _run_view(fp, P, tm, nt, inv_b, true_b, cp_acc, cp_par):
    """Projector + predictor for one view. Returns padded (z, p), each (bp, dp)."""
    bp, n_in = fp.shape
    dp = P['w1'].shape[1]
    hp = P['w4'].shape[1]

    row = lambda shape: pl.BlockSpec(shape, lambda i: (i, 0))   # batch-tiled
    res = lambda shape: pl.BlockSpec(shape, lambda i: (0, 0))   # VMEM-resident

    # Projector block 1: h1 = f @ W1, stats of h1.
    h1, ss1 = pl.pallas_call(
        functools.partial(_lin_stats_kernel, inv_b),
        out_shape=(jax.ShapeDtypeStruct((bp, dp), jnp.float32),
                   jax.ShapeDtypeStruct((2, dp), jnp.float32)),
        grid=(nt,),
        in_specs=[row((tm, n_in)), res((n_in, dp)), res((2, dp))],
        out_specs=(row((tm, dp)), res((2, dp))),
        compiler_params=cp_acc,
    )(fp, P['w1'], P['gb1'])

    # Projector block 2: a1 = relu(BN1(h1)); h2 = a1 @ W2; stats of h2.
    h2, ss2 = pl.pallas_call(
        functools.partial(_bn_act_lin_stats_kernel, inv_b, true_b, True),
        out_shape=(jax.ShapeDtypeStruct((bp, dp), jnp.float32),
                   jax.ShapeDtypeStruct((2, dp), jnp.float32)),
        grid=(nt,),
        in_specs=[row((tm, dp)), res((2, dp)), res((dp, dp)), res((2, dp))],
        out_specs=(row((tm, dp)), res((2, dp))),
        compiler_params=cp_acc,
    )(h1, ss1, P['w2'], P['gb2'])

    # Projector block 3: a2 = relu(BN2(h2)); h3 = a2 @ W3; stats of h3.
    h3, ss3 = pl.pallas_call(
        functools.partial(_bn_act_lin_stats_kernel, inv_b, true_b, True),
        out_shape=(jax.ShapeDtypeStruct((bp, dp), jnp.float32),
                   jax.ShapeDtypeStruct((2, dp), jnp.float32)),
        grid=(nt,),
        in_specs=[row((tm, dp)), res((2, dp)), res((dp, dp)), res((2, dp))],
        out_specs=(row((tm, dp)), res((2, dp))),
        compiler_params=cp_acc,
    )(h2, ss2, P['w3'], P['gb3'])

    # Projector output + predictor block 1: z = BN3(h3) (no ReLU); g = z @ W4; stats of g.
    z, g, ss4 = pl.pallas_call(
        functools.partial(_bn_act_lin_stats_emit_kernel, inv_b, true_b, False),
        out_shape=(jax.ShapeDtypeStruct((bp, dp), jnp.float32),
                   jax.ShapeDtypeStruct((bp, hp), jnp.float32),
                   jax.ShapeDtypeStruct((2, hp), jnp.float32)),
        grid=(nt,),
        in_specs=[row((tm, dp)), res((2, dp)), res((dp, hp)), res((2, hp))],
        out_specs=(row((tm, dp)), row((tm, hp)), res((2, hp))),
        compiler_params=cp_acc,
    )(h3, ss3, P['w4'], P['gb4'])

    # Predictor block 2: p = relu(BN4(g)) @ W5 + b5 (batch-parallel).
    p = pl.pallas_call(
        _bn_relu_lin_bias_kernel,
        out_shape=jax.ShapeDtypeStruct((bp, dp), jnp.float32),
        grid=(nt,),
        in_specs=[row((tm, hp)), res((2, hp)), res((hp, dp)), res((1, dp))],
        out_specs=row((tm, dp)),
        compiler_params=cp_par,
    )(g, ss4, P['w5'], P['b5'])

    return z, p


def simsiam_forward(f1, f2, params, *, tm=None):
    """f1, f2: backbone features (B, n_feat) [or (B, n_feat, 1, 1)].
    Returns the scalar SimSiam loss of the module's forward (t = 0 branch)."""
    f1 = f1.reshape(f1.shape[0], -1)   # torch.squeeze of the pooled backbone output
    f2 = f2.reshape(f2.shape[0], -1)
    assert f1.shape == f2.shape
    B, n_in = f1.shape
    dim = params['w1'].shape[1]
    hid = params['w4'].shape[1]
    assert params['w5'].shape[1] == dim, "predictor out dim must equal projector dim"

    dp = _round_up(dim, LANE)
    hp = _round_up(hid, LANE)
    P = _pad_params(params, n_in, dp, hp)

    # Batch tiling: tm multiple of 8 (sublane); 512 rows feed every MXU generation.
    if tm is None:
        tm = min(512, _round_up(B, SUBLANE))
    tm = _round_up(tm, SUBLANE)
    bp = _round_up(B, tm)
    nt = bp // tm
    true_b = B if bp != B else None     # skip masking entirely when no batch padding
    inv_b = 1.0 / B

    f1p = _pad2(f1, (bp, n_in))
    f2p = _pad2(f2, (bp, n_in))

    cp_acc = pltpu.CompilerParams(dimension_semantics=("arbitrary",),
                                  vmem_limit_bytes=VMEM_LIMIT_BYTES)
    cp_par = pltpu.CompilerParams(dimension_semantics=("parallel",),
                                  vmem_limit_bytes=VMEM_LIMIT_BYTES)

    # Each view goes through projector/predictor with its own batch statistics,
    # exactly like the two separate nn.Module calls in the PyTorch forward.
    z1, p1 = _run_view(f1p, P, tm, nt, inv_b, true_b, cp_acc, cp_par)
    z2, p2 = _run_view(f2p, P, tm, nt, inv_b, true_b, cp_acc, cp_par)

    row = lambda: pl.BlockSpec((tm, dp), lambda i: (i, 0))
    loss = pl.pallas_call(
        functools.partial(_cosine_loss_kernel, inv_b, true_b),
        out_shape=jax.ShapeDtypeStruct((1, 1), jnp.float32),
        grid=(nt,),
        in_specs=[row(), row(), row(), row()],
        out_specs=pl.BlockSpec((1, 1), lambda i: (0, 0)),
        compiler_params=cp_acc,
    )(p1, z2, p2, z1)
    return loss[0, 0]


# ----------------------------- pure-JAX reference -----------------------------
def _bn_ref(h, gamma, beta):
    mean = jnp.mean(h, axis=0, keepdims=True)
    var = jnp.mean((h - mean) ** 2, axis=0, keepdims=True)
    return (h - mean) / jnp.sqrt(var + BN_EPS) * gamma + beta


def simsiam_forward_ref(f1, f2, p):
    f1 = f1.reshape(f1.shape[0], -1).astype(jnp.float32)
    f2 = f2.reshape(f2.shape[0], -1).astype(jnp.float32)

    def projector(f):
        h = jnp.maximum(_bn_ref(f @ p['w1'], p['g1'], p['b1']), 0.0)
        h = jnp.maximum(_bn_ref(h @ p['w2'], p['g2'], p['b2']), 0.0)
        return _bn_ref(h @ p['w3'], p['g3'], p['b3'])

    def predictor(z):
        h = jnp.maximum(_bn_ref(z @ p['w4'], p['g4'], p['b4']), 0.0)
        return h @ p['w5'] + p['b5']

    def cos(a, b):
        dot = jnp.sum(a * b, axis=1)
        nn = jnp.sum(a * a, axis=1) * jnp.sum(b * b, axis=1)
        return dot / jnp.maximum(jnp.sqrt(nn), COS_EPS)

    z1, z2 = projector(f1), projector(f2)
    p1, p2 = predictor(z1), predictor(z2)
    return -0.5 * (jnp.mean(cos(p1, z2)) + jnp.mean(cos(p2, z1)))


if __name__ == "__main__":
    B = 8
    n_feat = 512    # ResNet-18 backbone feature width (module hard-codes 512)
    dim = 512       # projector width / output dim
    pred_dim = 256  # predictor hidden dim

    key = jax.random.PRNGKey(0)
    ks = jax.random.split(key, 16)

    f1 = jax.random.normal(ks[0], (B, n_feat), dtype=jnp.float32)
    # Second view = correlated features (two augmentations of the same images).
    f2 = f1 + 0.1 * jax.random.normal(ks[1], (B, n_feat), dtype=jnp.float32)

    def linw(k, fan_in, fan_out):
        return jax.random.normal(k, (fan_in, fan_out), jnp.float32) * (1.0 / fan_in) ** 0.5

    params = dict(
        w1=linw(ks[2], n_feat, dim),
        g1=1.0 + 0.1 * jax.random.normal(ks[3], (dim,), jnp.float32),
        b1=0.1 * jax.random.normal(ks[4], (dim,), jnp.float32),
        w2=linw(ks[5], dim, dim),
        g2=1.0 + 0.1 * jax.random.normal(ks[6], (dim,), jnp.float32),
        b2=0.1 * jax.random.normal(ks[7], (dim,), jnp.float32),
        w3=linw(ks[8], dim, dim),
        g3=jnp.ones((dim,), jnp.float32),          # fresh BatchNorm1d init
        b3=jnp.zeros((dim,), jnp.float32),
        w4=linw(ks[9], dim, pred_dim),
        g4=1.0 + 0.1 * jax.random.normal(ks[10], (pred_dim,), jnp.float32),
        b4=0.1 * jax.random.normal(ks[11], (pred_dim,), jnp.float32),
        w5=linw(ks[12], pred_dim, dim),
        b5=0.01 * jax.random.normal(ks[13], (dim,), jnp.float32),
    )

    loss = simsiam_forward(f1, f2, params)
    loss = jax.block_until_ready(loss)

    ref = simsiam_forward_ref(f1, f2, params)
    assert loss.shape == ()
    assert bool(jnp.isfinite(loss)), "non-finite loss"
    assert jnp.allclose(loss, ref, atol=2e-3, rtol=2e-3), (float(loss), float(ref))

    print("KERNEL_OK")
</pallas_src>

<mosaic_0001>
module attributes {stable_mosaic.version = 11 : i64} {
  func.func @_lin_stats_kernel(%arg0: i32, %arg1: memref<8x512xf32, #tpu.memory_space<vmem>>, %arg2: memref<512x512xf32, #tpu.memory_space<vmem>>, %arg3: memref<2x512xf32, #tpu.memory_space<vmem>>, %arg4: memref<8x512xf32, #tpu.memory_space<vmem>>, %arg5: memref<2x512xf32, #tpu.memory_space<vmem>>) attributes {dimension_semantics = [#tpu.dimension_semantics<arbitrary>], iteration_bounds = array<i64: 1>, scalar_prefetch = 0 : i64, scratch_operands = 0 : i64, tpu.core_type = #tpu.core_type<tc>, window_params = [{transform_indices = @transform_0, window_bounds = array<i64: 8, 512>}, {pipeline_mode = #tpu.pipeline_mode<synchronous>, transform_indices = @transform_1, window_bounds = array<i64: 512, 512>}, {pipeline_mode = #tpu.pipeline_mode<synchronous>, transform_indices = @transform_2, window_bounds = array<i64: 2, 512>}, {transform_indices = @transform_3, window_bounds = array<i64: 8, 512>}, {pipeline_mode = #tpu.pipeline_mode<synchronous>, transform_indices = @transform_4, window_bounds = array<i64: 2, 512>}]} {
    %c0 = arith.constant 0 : index
    %c0_0 = arith.constant 0 : index
    %0 = vector.load %arg1[%c0, %c0_0] : memref<8x512xf32, #tpu.memory_space<vmem>>, vector<8x512xf32>
    %c0_1 = arith.constant 0 : index
    %c0_2 = arith.constant 0 : index
    %1 = vector.load %arg2[%c0_1, %c0_2] : memref<512x512xf32, #tpu.memory_space<vmem>>, vector<512x512xf32>
    %cst = arith.constant dense<0.000000e+00> : vector<8x512xf32>
    %2 = tpu.matmul %0, %1, %cst {dimension_numbers = #tpu.dot_dimension_numbers<[1], [0], [0], [1], [0, 0, 1, 1], [], []>} : vector<8x512xf32>, vector<512x512xf32>, vector<8x512xf32> -> vector<8x512xf32>
    %c0_3 = arith.constant 0 : index
    %c0_4 = arith.constant 0 : index
    %3 = vector.load %arg4[%c0_3, %c0_4] : memref<8x512xf32, #tpu.memory_space<vmem>>, vector<8x512xf32>
    tpu.vector_store %arg4[%c0_3, %c0_4], %2 {strides = array<i32>} : memref<8x512xf32, #tpu.memory_space<vmem>>, vector<8x512xf32>,
    %c0_i32 = arith.constant 0 : i32
    %4 = arith.cmpi eq, %arg0, %c0_i32 : i32
    %5 = arith.extui %4 : i1 to i32
    %c0_i32_5 = arith.constant 0 : i32
    %6 = arith.cmpi ne, %5, %c0_i32_5 : i32
    scf.if %6 {
      %cst_17 = arith.constant 0.000000e+00 : f32
      %21 = vector.broadcast %cst_17 : f32 to vector<2x512xf32>
      %c0_18 = arith.constant 0 : index
      %c0_19 = arith.constant 0 : index
      %22 = vector.load %arg5[%c0_18, %c0_19] : memref<2x512xf32, #tpu.memory_space<vmem>>, vector<2x512xf32>
      tpu.vector_store %arg5[%c0_18, %c0_19], %21 {strides = array<i32>} : memref<2x512xf32, #tpu.memory_space<vmem>>, vector<2x512xf32>,
    } else {
    }
    %c0_6 = arith.constant 0 : index
    %c0_7 = arith.constant 0 : index
    %7 = vector.load %arg5[%c0_6, %c0_7] : memref<2x512xf32, #tpu.memory_space<vmem>>, vector<1x512xf32>
    %cst_8 = arith.constant dense<0.000000e+00> : vector<512xf32>
    %8 = vector.multi_reduction <add>, %2, %cst_8 [0] : vector<8x512xf32> to vector<512xf32>
    %9 = vector.shape_cast %8 : vector<512xf32> to vector<1x512xf32>
    %10 = arith.addf %7, %9 : vector<1x512xf32>
    %c0_9 = arith.constant 0 : index
    %c0_10 = arith.constant 0 : index
    %11 = vector.load %arg5[%c0_9, %c0_10] : memref<2x512xf32, #tpu.memory_space<vmem>>, vector<1x512xf32>
    tpu.vector_store %arg5[%c0_9, %c0_10], %10 {strides = array<i32>} : memref<2x512xf32, #tpu.memory_space<vmem>>, vector<1x512xf32>,
    %c1 = arith.constant 1 : index
    %c0_11 = arith.constant 0 : index
    %12 = vector.load %arg5[%c1, %c0_11] : memref<2x512xf32, #tpu.memory_space<vmem>>, vector<1x512xf32>
    %13 = arith.mulf %2, %2 : vector<8x512xf32>
    %cst_12 = arith.constant dense<0.000000e+00> : vector<512xf32>
    %14 = vector.multi_reduction <add>, %13, %cst_12 [0] : vector<8x512xf32> to vector<512xf32>
    %15 = vector.shape_cast %14 : vector<512xf32> to vector<1x512xf32>
    %16 = arith.addf %12, %15 : vector<1x512xf32>
    %c1_13 = arith.constant 1 : index
    %c0_14 = arith.constant 0 : index
    %17 = vector.load %arg5[%c1_13, %c0_14] : memref<2x512xf32, #tpu.memory_space<vmem>>, vector<1x512xf32>
    tpu.vector_store %arg5[%c1_13, %c0_14], %16 {strides = array<i32>} : memref<2x512xf32, #tpu.memory_space<vmem>>, vector<1x512xf32>,
    %c0_i32_15 = arith.constant 0 : i32
    %18 = arith.cmpi eq, %arg0, %c0_i32_15 : i32
    %19 = arith.extui %18 : i1 to i32
    %c0_i32_16 = arith.constant 0 : i32
    %20 = arith.cmpi ne, %19, %c0_i32_16 : i32
    scf.if %20 {
      %c0_17 = arith.constant 0 : index
      %c0_18 = arith.constant 0 : index
      %21 = vector.load %arg5[%c0_17, %c0_18] : memref<2x512xf32, #tpu.memory_space<vmem>>, vector<1x512xf32>
      %cst_19 = arith.constant 1.250000e-01 : f32
      %22 = vector.broadcast %cst_19 : f32 to vector<1x512xf32>
      %23 = arith.mulf %21, %22 : vector<1x512xf32>
      %c1_20 = arith.constant 1 : index
      %c0_21 = arith.constant 0 : index
      %24 = vector.load %arg5[%c1_20, %c0_21] : memref<2x512xf32, #tpu.memory_space<vmem>>, vector<1x512xf32>
      %cst_22 = arith.constant 1.250000e-01 : f32
      %25 = vector.broadcast %cst_22 : f32 to vector<1x512xf32>
      %26 = arith.mulf %24, %25 : vector<1x512xf32>
      %27 = arith.mulf %23, %23 : vector<1x512xf32>
      %28 = arith.subf %26, %27 : vector<1x512xf32>
      %cst_23 = arith.constant 0.000000e+00 : f32
      %29 = vector.broadcast %cst_23 : f32 to vector<1x512xf32>
      %30 = arith.maximumf %28, %29 : vector<1x512xf32>
      %cst_24 = arith.constant 9.99999974E-6 : f32
      %31 = vector.broadcast %cst_24 : f32 to vector<1x512xf32>
      %32 = arith.addf %30, %31 : vector<1x512xf32>
      %33 = math.rsqrt %32 : vector<1x512xf32>
      %c0_25 = arith.constant 0 : index
      %c0_26 = arith.constant 0 : index
      %34 = vector.load %arg3[%c0_25, %c0_26] : memref<2x512xf32, #tpu.memory_space<vmem>>, vector<1x512xf32>
      %35 = arith.mulf %34, %33 : vector<1x512xf32>
      %c1_27 = arith.constant 1 : index
      %c0_28 = arith.constant 0 : index
      %36 = vector.load %arg3[%c1_27, %c0_28] : memref<2x512xf32, #tpu.memory_space<vmem>>, vector<1x512xf32>
      %37 = arith.mulf %23, %35 : vector<1x512xf32>
      %38 = arith.subf %36, %37 : vector<1x512xf32>
      %c0_29 = arith.constant 0 : index
      %c0_30 = arith.constant 0 : index
      %39 = vector.load %arg5[%c0_29, %c0_30] : memref<2x512xf32, #tpu.memory_space<vmem>>, vector<1x512xf32>
      tpu.vector_store %arg5[%c0_29, %c0_30], %35 {strides = array<i32>} : memref<2x512xf32, #tpu.memory_space<vmem>>, vector<1x512xf32>,
      %c1_31 = arith.constant 1 : index
      %c0_32 = arith.constant 0 : index
      %40 = vector.load %arg5[%c1_31, %c0_32] : memref<2x512xf32, #tpu.memory_space<vmem>>, vector<1x512xf32>
      tpu.vector_store %arg5[%c1_31, %c0_32], %38 {strides = array<i32>} : memref<2x512xf32, #tpu.memory_space<vmem>>, vector<1x512xf32>,
    } else {
    }
    return
  }
  func.func @transform_0(%arg0: i32) -> (i32, i32) {
    %c0_i32 = arith.constant 0 : i32
    %c0_i32_0 = arith.constant 0 : i32
    return %arg0, %c0_i32 : i32, i32
  }
  func.func @transform_1(%arg0: i32) -> (i32, i32) {
    %c0_i32 = arith.constant 0 : i32
    %c0_i32_0 = arith.constant 0 : i32
    %c0_i32_1 = arith.constant 0 : i32
    return %c0_i32, %c0_i32_0 : i32, i32
  }
  func.func @transform_2(%arg0: i32) -> (i32, i32) {
    %c0_i32 = arith.constant 0 : i32
    %c0_i32_0 = arith.constant 0 : i32
    %c0_i32_1 = arith.constant 0 : i32
    return %c0_i32, %c0_i32_0 : i32, i32
  }
  func.func @transform_3(%arg0: i32) -> (i32, i32) {
    %c0_i32 = arith.constant 0 : i32
    %c0_i32_0 = arith.constant 0 : i32
    return %arg0, %c0_i32 : i32, i32
  }
  func.func @transform_4(%arg0: i32) -> (i32, i32) {
    %c0_i32 = arith.constant 0 : i32
    %c0_i32_0 = arith.constant 0 : i32
    %c0_i32_1 = arith.constant 0 : i32
    return %c0_i32, %c0_i32_0 : i32, i32
  }
}

</mosaic_0001>

<llo_original>
// kernel: tpu_custom_call.1
$region0: #{tpu_custom_call.1}
  #allocation0 [shape = 'u32[]', space=smem, size = 0x4, offset = 0x4, fixed_abs, tag = 'smem constant byte address 0x4 - core index']
  #allocation1 [shape = 'u32[72,128]{1,0:T(1,128)}', space=vmem, size = 0x9000, scoped, tag = 'internal scratch']
  %s0 = inlined_call_operand.hbm [shape: f32[8,512], index: 0, kind: input, shape index: {}]
  %s1 = inlined_call_operand.hbm [shape: f32[512,512], index: 1, kind: input, shape index: {}]
  %s2 = inlined_call_operand.hbm [shape: f32[2,512], index: 2, kind: input, shape index: {}]
  %s3 = inlined_call_operand.hbm [shape: f32[8,512], index: 3, kind: output, shape index: {0}]
  %s4 = inlined_call_operand.hbm [shape: f32[2,512], index: 4, kind: output, shape index: {1}]
  %5 = xla_tuple %s3, %s4
  %s6 = sld [smem:[#allocation0]]
  $region50: #{tpu_custom_call.1} parent=0
    _
  %s8 = ssub.s32 1, %s6
  %s9 = scalar_select 0, %s8, %s6
  $region1: #{tpu_custom_call.1} parent=0
    #allocation2 [shape = 'u8[16384]{0}', space=vmem, size = 0x4000, scoped, tag = 'input window, operand 0, single buffered']
    #allocation3 [shape = 's32[1]{0}', space=sflag, size = 0x4, scoped, tag = 'scoped memory for tpu_custom_call.1']
    #allocation4 [shape = 's32[1]{0}', space=sflag, size = 0x4, scoped, tag = 'scoped memory for tpu_custom_call.1']
    #allocation5 [shape = 'u8[1048576]{0}', space=vmem, size = 0x100000, scoped, tag = 'input window, operand 1, single buffered']
    #allocation6 [shape = 's32[1]{0}', space=sflag, size = 0x4, scoped, tag = 'scoped memory for tpu_custom_call.1']
    #allocation7 [shape = 'u8[4096]{0}', space=vmem, size = 0x1000, scoped, tag = 'input window, operand 2, single buffered']
    #allocation8 [shape = 'u8[16384]{0}', space=vmem, size = 0x4000, scoped, tag = 'output window, operand 0, single buffered']
    #allocation9 [shape = 'u8[4096]{0}', space=vmem, size = 0x1000, scoped, tag = 'output window, operand 1, single buffered']
    #allocation10 [shape = 's32[1]{0}', space=sflag, size = 0x4, scoped, tag = 'scoped memory for tpu_custom_call.1']
    %10 = vsyncpa [#allocation3], 0
    %11 = vsyncpa [#allocation6], 0
    %12 = vsyncpa [#allocation4], 0
    %13 = vsyncpa [#allocation10], 0
    // Predicated region
    $region2: #{tpu_custom_call.1} parent=1 // pred_check
      _
    $region3: #{tpu_custom_call.1} parent=1 // pred_check_branch
      %15 = sbr.rel (0) target = $region5
    $region4: #{tpu_custom_call.1} parent=1 // pred_region
      %17 = vsyncadd [#allocation3], 0
      %s19 = sshll.u32 %s0, 4
      %s20 = int_to_ptr.hbm [resolvable:$true] %s19
      %s21 = sshll.u32 [#allocation2], 4
      %s22 = int_to_ptr.vmem [resolvable:$true] %s21
      %24 = dma.hbm_to_vmem [thread:$0]  %s20, 512, %s22, [#allocation3]
    $region5: #{tpu_custom_call.1} parent=1 // pred_fallthru
      _
    // Predicated region
    $region6: #{tpu_custom_call.1} parent=1 // pred_check
      _
    $region7: #{tpu_custom_call.1} parent=1 // pred_check_branch
      %26 = sbr.rel (0) target = $region9
    $region8: #{tpu_custom_call.1} parent=1 // pred_region
      %28 = vsyncadd [#allocation6], 0
      %s29 = sshll.u32 %s1, 4
      %s30 = int_to_ptr.hbm [resolvable:$true] %s29
      %s31 = sshll.u32 [#allocation5], 4
      %s32 = int_to_ptr.vmem [resolvable:$true] %s31
      %37 = dma.hbm_to_vmem [thread:$0]  %s30, 32768, %s32, [#allocation6], 512, 512, 32
    $region9: #{tpu_custom_call.1} parent=1 // pred_fallthru
      _
    // Predicated region
    $region10: #{tpu_custom_call.1} parent=1 // pred_check
      _
    $region11: #{tpu_custom_call.1} parent=1 // pred_check_branch
      %39 = sbr.rel (0) target = $region13
    $region12: #{tpu_custom_call.1} parent=1 // pred_region
      %41 = vsyncadd [#allocation6], 0
      %s43 = sshll.u32 %s2, 4
      %s44 = int_to_ptr.hbm [resolvable:$true] %s43
      %s45 = sshll.u32 [#allocation7], 4
      %s46 = int_to_ptr.vmem [resolvable:$true] %s45
      %48 = dma.hbm_to_vmem [thread:$0]  %s44, 128, %s46, [#allocation6]
    $region13: #{tpu_custom_call.1} parent=1 // pred_fallthru
      _
    // Predicated region
    $region14: #{tpu_custom_call.1} parent=1 // pred_check
      _
    $region15: #{tpu_custom_call.1} parent=1 // pred_check_branch
      %50 = sbr.rel (0) target = $region17
    $region16: #{tpu_custom_call.1} parent=1 // pred_region
      %52 = dma.done [#allocation3], 512
    $region17: #{tpu_custom_call.1} parent=1 // pred_fallthru
      _
    // Predicated region
    $region18: #{tpu_custom_call.1} parent=1 // pred_check
      _
    $region19: #{tpu_custom_call.1} parent=1 // pred_check_branch
      %54 = sbr.rel (0) target = $region21
    $region20: #{tpu_custom_call.1} parent=1 // pred_region
      %56 = dma.done [#allocation6], 32768
    $region21: #{tpu_custom_call.1} parent=1 // pred_fallthru
      _
    // Predicated region
    $region22: #{tpu_custom_call.1} parent=1 // pred_check
      _
    $region23: #{tpu_custom_call.1} parent=1 // pred_check_branch
      %58 = sbr.rel (0) target = $region25
    $region24: #{tpu_custom_call.1} parent=1 // pred_region
      %60 = dma.done [#allocation6], 128
    $region25: #{tpu_custom_call.1} parent=1 // pred_fallthru
      _
    %v61 = vld [vmem:[#allocation2] sm:$0xff]
    %v62 = vld [vmem:[#allocation2 + $0x8] sm:$0xff]
    %v63 = vld [vmem:[#allocation2 + $0x10] sm:$0xff]
    %v64 = vld [vmem:[#allocation2 + $0x18] sm:$0xff]
    %v65 = vld [vmem:[#allocation5] sm:$0xff]
    %v66 = vld [vmem:[#allocation5 + $0x8] sm:$0xff]
    %v67 = vld [vmem:[#allocation5 + $0x10] sm:$0xff]
    %v68 = vld [vmem:[#allocation5 + $0x18] sm:$0xff]
    %v69 = vld [vmem:[#allocation5 + $0x20] sm:$0xff]
    %v70 = vld [vmem:[#allocation5 + $0x28] sm:$0xff]
    %v71 = vld [vmem:[#allocation5 + $0x30] sm:$0xff]
    %v72 = vld [vmem:[#allocation5 + $0x38] sm:$0xff]
    %v73 = vld [vmem:[#allocation5 + $0x40] sm:$0xff]
    %v74 = vld [vmem:[#allocation5 + $0x48] sm:$0xff]
    %v75 = vld [vmem:[#allocation5 + $0x50] sm:$0xff]
    %v76 = vld [vmem:[#allocation5 + $0x58] sm:$0xff]
    %v77 = vld [vmem:[#allocation5 + $0x60] sm:$0xff]
    %v78 = vld [vmem:[#allocation5 + $0x68] sm:$0xff]
    %v79 = vld [vmem:[#allocation5 + $0x70] sm:$0xff]
    %v80 = vld [vmem:[#allocation5 + $0x78] sm:$0xff]
    %v81 = vld [vmem:[#allocation5 + $0x80] sm:$0xff]
    %v82 = vld [vmem:[#allocation5 + $0x88] sm:$0xff]
    %v83 = vld [vmem:[#allocation5 + $0x90] sm:$0xff]
    %v84 = vld [vmem:[#allocation5 + $0x98] sm:$0xff]
    %v85 = vld [vmem:[#allocation5 + $0xa0] sm:$0xff]
    %v86 = vld [vmem:[#allocation5 + $0xa8] sm:$0xff]
    %v87 = vld [vmem:[#allocation5 + $0xb0] sm:$0xff]
    %v88 = vld [vmem:[#allocation5 + $0xb8] sm:$0xff]
    %v89 = vld [vmem:[#allocation5 + $0xc0] sm:$0xff]
    %v90 = vld [vmem:[#allocation5 + $0xc8] sm:$0xff]
    %v91 = vld [vmem:[#allocation5 + $0xd0] sm:$0xff]
    %v92 = vld [vmem:[#allocation5 + $0xd8] sm:$0xff]
    %v93 = vld [vmem:[#allocation5 + $0xe0] sm:$0xff]
    %v94 = vld [vmem:[#allocation5 + $0xe8] sm:$0xff]
    %v95 = vld [vmem:[#allocation5 + $0xf0] sm:$0xff]
    %v96 = vld [vmem:[#allocation5 + $0xf8] sm:$0xff]
    %v97 = vld [vmem:[#allocation5 + $0x100] sm:$0xff]
    %v98 = vld [vmem:[#allocation5 + $0x108] sm:$0xff]
    %v99 = vld [vmem:[#allocation5 + $0x110] sm:$0xff]
    %v100 = vld [vmem:[#allocation5 + $0x118] sm:$0xff]
    %v101 = vld [vmem:[#allocation5 + $0x120] sm:$0xff]
    %v102 = vld [vmem:[#allocation5 + $0x128] sm:$0xff]
    %v103 = vld [vmem:[#allocation5 + $0x130] sm:$0xff]
    %v104 = vld [vmem:[#allocation5 + $0x138] sm:$0xff]
    %v105 = vld [vmem:[#allocation5 + $0x140] sm:$0xff]
    %v106 = vld [vmem:[#allocation5 + $0x148] sm:$0xff]
    %v107 = vld [vmem:[#allocation5 + $0x150] sm:$0xff]
    %v108 = vld [vmem:[#allocation5 + $0x158] sm:$0xff]
    %v109 = vld [vmem:[#allocation5 + $0x160] sm:$0xff]
    %v110 = vld [vmem:[#allocation5 + $0x168] sm:$0xff]
    %v111 = vld [vmem:[#allocation5 + $0x170] sm:$0xff]
    %v112 = vld [vmem:[#allocation5 + $0x178] sm:$0xff]
    %v113 = vld [vmem:[#allocation5 + $0x180] sm:$0xff]
    %v114 = vld [vmem:[#allocation5 + $0x188] sm:$0xff]
    %v115 = vld [vmem:[#allocation5 + $0x190] sm:$0xff]
    %v116 = vld [vmem:[#allocation5 + $0x198] sm:$0xff]
    %v117 = vld [vmem:[#allocation5 + $0x1a0] sm:$0xff]
    %v118 = vld [vmem:[#allocation5 + $0x1a8] sm:$0xff]
    %v119 = vld [vmem:[#allocation5 + $0x1b0] sm:$0xff]
    %v120 = vld [vmem:[#allocation5 + $0x1b8] sm:$0xff]
    %v121 = vld [vmem:[#allocation5 + $0x1c0] sm:$0xff]
    %v122 = vld [vmem:[#allocation5 + $0x1c8] sm:$0xff]
    %v123 = vld [vmem:[#allocation5 + $0x1d0] sm:$0xff]
    %v124 = vld [vmem:[#allocation5 + $0x1d8] sm:$0xff]
    %v125 = vld [vmem:[#allocation5 + $0x1e0] sm:$0xff]
    %v126 = vld [vmem:[#allocation5 + $0x1e8] sm:$0xff]
    %v127 = vld [vmem:[#allocation5 + $0x1f0] sm:$0xff]
    %v128 = vld [vmem:[#allocation5 + $0x1f8] sm:$0xff]
    %v129 = vld [vmem:[#allocation5 + $0x200] sm:$0xff]
    %v130 = vld [vmem:[#allocation5 + $0x208] sm:$0xff]
    %v131 = vld [vmem:[#allocation5 + $0x210] sm:$0xff]
    %v132 = vld [vmem:[#allocation5 + $0x218] sm:$0xff]
    %v133 = vld [vmem:[#allocation5 + $0x220] sm:$0xff]
    %v134 = vld [vmem:[#allocation5 + $0x228] sm:$0xff]
    %v135 = vld [vmem:[#allocation5 + $0x230] sm:$0xff]
    %v136 = vld [vmem:[#allocation5 + $0x238] sm:$0xff]
    %v137 = vld [vmem:[#allocation5 + $0x240] sm:$0xff]
    %v138 = vld [vmem:[#allocation5 + $0x248] sm:$0xff]
    %v139 = vld [vmem:[#allocation5 + $0x250] sm:$0xff]
    %v140 = vld [vmem:[#allocation5 + $0x258] sm:$0xff]
    %v141 = vld [vmem:[#allocation5 + $0x260] sm:$0xff]
    %v142 = vld [vmem:[#allocation5 + $0x268] sm:$0xff]
    %v143 = vld [vmem:[#allocation5 + $0x270] sm:$0xff]
    %v144 = vld [vmem:[#allocation5 + $0x278] sm:$0xff]
    %v145 = vld [vmem:[#allocation5 + $0x280] sm:$0xff]
    %v146 = vld [vmem:[#allocation5 + $0x288] sm:$0xff]
    %v147 = vld [vmem:[#allocation5 + $0x290] sm:$0xff]
    %v148 = vld [vmem:[#allocation5 + $0x298] sm:$0xff]
    %v149 = vld [vmem:[#allocation5 + $0x2a0] sm:$0xff]
    %v150 = vld [vmem:[#allocation5 + $0x2a8] sm:$0xff]
    %v151 = vld [vmem:[#allocation5 + $0x2b0] sm:$0xff]
    %v152 = vld [vmem:[#allocation5 + $0x2b8] sm:$0xff]
    %v153 = vld [vmem:[#allocation5 + $0x2c0] sm:$0xff]
    %v154 = vld [vmem:[#allocation5 + $0x2c8] sm:$0xff]
    %v155 = vld [vmem:[#allocation5 + $0x2d0] sm:$0xff]
    %v156 = vld [vmem:[#allocation5 + $0x2d8] sm:$0xff]
    %v157 = vld [vmem:[#allocation5 + $0x2e0] sm:$0xff]
    %v158 = vld [vmem:[#allocation5 + $0x2e8] sm:$0xff]
    %v159 = vld [vmem:[#allocation5 + $0x2f0] sm:$0xff]
    %v160 = vld [vmem:[#allocation5 + $0x2f8] sm:$0xff]
    %v161 = vld [vmem:[#allocation5 + $0x300] sm:$0xff]
    %v162 = vld [vmem:[#allocation5 + $0x308] sm:$0xff]
    %v163 = vld [vmem:[#allocation5 + $0x310] sm:$0xff]
    %v164 = vld [vmem:[#allocation5 + $0x318] sm:$0xff]
    %v165 = vld [vmem:[#allocation5 + $0x320] sm:$0xff]
    %v166 = vld [vmem:[#allocation5 + $0x328] sm:$0xff]
    %v167 = vld [vmem:[#allocation5 + $0x330] sm:$0xff]
    %v168 = vld [vmem:[#allocation5 + $0x338] sm:$0xff]
    %v169 = vld [vmem:[#allocation5 + $0x340] sm:$0xff]
    %v170 = vld [vmem:[#allocation5 + $0x348] sm:$0xff]
    %v171 = vld [vmem:[#allocation5 + $0x350] sm:$0xff]
    %v172 = vld [vmem:[#allocation5 + $0x358] sm:$0xff]
    %v173 = vld [vmem:[#allocation5 + $0x360] sm:$0xff]
    %v174 = vld [vmem:[#allocation5 + $0x368] sm:$0xff]
    %v175 = vld [vmem:[#allocation5 + $0x370] sm:$0xff]
    %v176 = vld [vmem:[#allocation5 + $0x378] sm:$0xff]
    %v177 = vld [vmem:[#allocation5 + $0x380] sm:$0xff]
    %v178 = vld [vmem:[#allocation5 + $0x388] sm:$0xff]
    %v179 = vld [vmem:[#allocation5 + $0x390] sm:$0xff]
    %v180 = vld [vmem:[#allocation5 + $0x398] sm:$0xff]
    %v181 = vld [vmem:[#allocation5 + $0x3a0] sm:$0xff]
    %v182 = vld [vmem:[#allocation5 + $0x3a8] sm:$0xff]
    %v183 = vld [vmem:[#allocation5 + $0x3b0] sm:$0xff]
    %v184 = vld [vmem:[#allocation5 + $0x3b8] sm:$0xff]
    %v185 = vld [vmem:[#allocation5 + $0x3c0] sm:$0xff]
    %v186 = vld [vmem:[#allocation5 + $0x3c8] sm:$0xff]
    %v187 = vld [vmem:[#allocation5 + $0x3d0] sm:$0xff]
    %v188 = vld [vmem:[#allocation5 + $0x3d8] sm:$0xff]
    %v189 = vld [vmem:[#allocation5 + $0x3e0] sm:$0xff]
    %v190 = vld [vmem:[#allocation5 + $0x3e8] sm:$0xff]
    %v191 = vld [vmem:[#allocation5 + $0x3f0] sm:$0xff]
    %v192 = vld [vmem:[#allocation5 + $0x3f8] sm:$0xff]
    %v193 = vld [vmem:[#allocation5 + $0x400] sm:$0xff]
    %v194 = vld [vmem:[#allocation5 + $0x408] sm:$0xff]
    %v195 = vld [vmem:[#allocation5 + $0x410] sm:$0xff]
    %v196 = vld [vmem:[#allocation5 + $0x418] sm:$0xff]
    %v197 = vld [vmem:[#allocation5 + $0x420] sm:$0xff]
    %v198 = vld [vmem:[#allocation5 + $0x428] sm:$0xff]
    %v199 = vld [vmem:[#allocation5 + $0x430] sm:$0xff]
    %v200 = vld [vmem:[#allocation5 + $0x438] sm:$0xff]
    %v201 = vld [vmem:[#allocation5 + $0x440] sm:$0xff]
    %v202 = vld [vmem:[#allocation5 + $0x448] sm:$0xff]
    %v203 = vld [vmem:[#allocation5 + $0x450] sm:$0xff]
    %v204 = vld [vmem:[#allocation5 + $0x458] sm:$0xff]
    %v205 = vld [vmem:[#allocation5 + $0x460] sm:$0xff]
    %v206 = vld [vmem:[#allocation5 + $0x468] sm:$0xff]
    %v207 = vld [vmem:[#allocation5 + $0x470] sm:$0xff]
    %v208 = vld [vmem:[#allocation5 + $0x478] sm:$0xff]
    %v209 = vld [vmem:[#allocation5 + $0x480] sm:$0xff]
    %v210 = vld [vmem:[#allocation5 + $0x488] sm:$0xff]
    %v211 = vld [vmem:[#allocation5 + $0x490] sm:$0xff]
    %v212 = vld [vmem:[#allocation5 + $0x498] sm:$0xff]
    %v213 = vld [vmem:[#allocation5 + $0x4a0] sm:$0xff]
    %v214 = vld [vmem:[#allocation5 + $0x4a8] sm:$0xff]
    %v215 = vld [vmem:[#allocation5 + $0x4b0] sm:$0xff]
    %v216 = vld [vmem:[#allocation5 + $0x4b8] sm:$0xff]
    %v217 = vld [vmem:[#allocation5 + $0x4c0] sm:$0xff]
    %v218 = vld [vmem:[#allocation5 + $0x4c8] sm:$0xff]
    %v219 = vld [vmem:[#allocation5 + $0x4d0] sm:$0xff]
    %v220 = vld [vmem:[#allocation5 + $0x4d8] sm:$0xff]
    %v221 = vld [vmem:[#allocation5 + $0x4e0] sm:$0xff]
    %v222 = vld [vmem:[#allocation5 + $0x4e8] sm:$0xff]
    %v223 = vld [vmem:[#allocation5 + $0x4f0] sm:$0xff]
    %v224 = vld [vmem:[#allocation5 + $0x4f8] sm:$0xff]
    %v225 = vld [vmem:[#allocation5 + $0x500] sm:$0xff]
    %v226 = vld [vmem:[#allocation5 + $0x508] sm:$0xff]
    %v227 = vld [vmem:[#allocation5 + $0x510] sm:$0xff]
    %v228 = vld [vmem:[#allocation5 + $0x518] sm:$0xff]
    %v229 = vld [vmem:[#allocation5 + $0x520] sm:$0xff]
    %v230 = vld [vmem:[#allocation5 + $0x528] sm:$0xff]
    %v231 = vld [vmem:[#allocation5 + $0x530] sm:$0xff]
    %v232 = vld [vmem:[#allocation5 + $0x538] sm:$0xff]
    %v233 = vld [vmem:[#allocation5 + $0x540] sm:$0xff]
    %v234 = vld [vmem:[#allocation5 + $0x548] sm:$0xff]
    %v235 = vld [vmem:[#allocation5 + $0x550] sm:$0xff]
    %v236 = vld [vmem:[#allocation5 + $0x558] sm:$0xff]
    %v237 = vld [vmem:[#allocation5 + $0x560] sm:$0xff]
    %v238 = vld [vmem:[#allocation5 + $0x568] sm:$0xff]
    %v239 = vld [vmem:[#allocation5 + $0x570] sm:$0xff]
    %v240 = vld [vmem:[#allocation5 + $0x578] sm:$0xff]
    %v241 = vld [vmem:[#allocation5 + $0x580] sm:$0xff]
    %v242 = vld [vmem:[#allocation5 + $0x588] sm:$0xff]
    %v243 = vld [vmem:[#allocation5 + $0x590] sm:$0xff]
    %v244 = vld [vmem:[#allocation5 + $0x598] sm:$0xff]
    %v245 = vld [vmem:[#allocation5 + $0x5a0] sm:$0xff]
    %v246 = vld [vmem:[#allocation5 + $0x5a8] sm:$0xff]
    %v247 = vld [vmem:[#allocation5 + $0x5b0] sm:$0xff]
    %v248 = vld [vmem:[#allocation5 + $0x5b8] sm:$0xff]
    %v249 = vld [vmem:[#allocation5 + $0x5c0] sm:$0xff]
    %v250 = vld [vmem:[#allocation5 + $0x5c8] sm:$0xff]
    %v251 = vld [vmem:[#allocation5 + $0x5d0] sm:$0xff]
    %v252 = vld [vmem:[#allocation5 + $0x5d8] sm:$0xff]
    %v253 = vld [vmem:[#allocation5 + $0x5e0] sm:$0xff]
    %v254 = vld [vmem:[#allocation5 + $0x5e8] sm:$0xff]
    %v255 = vld [vmem:[#allocation5 + $0x5f0] sm:$0xff]
    %v256 = vld [vmem:[#allocation5 + $0x5f8] sm:$0xff]
    %v257 = vld [vmem:[#allocation5 + $0x600] sm:$0xff]
    %v258 = vld [vmem:[#allocation5 + $0x608] sm:$0xff]
    %v259 = vld [vmem:[#allocation5 + $0x610] sm:$0xff]
    %v260 = vld [vmem:[#allocation5 + $0x618] sm:$0xff]
    %v261 = vld [vmem:[#allocation5 + $0x620] sm:$0xff]
    %v262 = vld [vmem:[#allocation5 + $0x628] sm:$0xff]
    %v263 = vld [vmem:[#allocation5 + $0x630] sm:$0xff]
    %v264 = vld [vmem:[#allocation5 + $0x638] sm:$0xff]
    %v265 = vld [vmem:[#allocation5 + $0x640] sm:$0xff]
    %v266 = vld [vmem:[#allocation5 + $0x648] sm:$0xff]
    %v267 = vld [vmem:[#allocation5 + $0x650] sm:$0xff]
    %v268 = vld [vmem:[#allocation5 + $0x658] sm:$0xff]
    %v269 = vld [vmem:[#allocation5 + $0x660] sm:$0xff]
    %v270 = vld [vmem:[#allocation5 + $0x668] sm:$0xff]
    %v271 = vld [vmem:[#allocation5 + $0x670] sm:$0xff]
    %v272 = vld [vmem:[#allocation5 + $0x678] sm:$0xff]
    %v273 = vld [vmem:[#allocation5 + $0x680] sm:$0xff]
    %v274 = vld [vmem:[#allocation5 + $0x688] sm:$0xff]
    %v275 = vld [vmem:[#allocation5 + $0x690] sm:$0xff]
    %v276 = vld [vmem:[#allocation5 + $0x698] sm:$0xff]
    %v277 = vld [vmem:[#allocation5 + $0x6a0] sm:$0xff]
    %v278 = vld [vmem:[#allocation5 + $0x6a8] sm:$0xff]
    %v279 = vld [vmem:[#allocation5 + $0x6b0] sm:$0xff]
    %v280 = vld [vmem:[#allocation5 + $0x6b8] sm:$0xff]
    %v281 = vld [vmem:[#allocation5 + $0x6c0] sm:$0xff]
    %v282 = vld [vmem:[#allocation5 + $0x6c8] sm:$0xff]
    %v283 = vld [vmem:[#allocation5 + $0x6d0] sm:$0xff]
    %v284 = vld [vmem:[#allocation5 + $0x6d8] sm:$0xff]
    %v285 = vld [vmem:[#allocation5 + $0x6e0] sm:$0xff]
    %v286 = vld [vmem:[#allocation5 + $0x6e8] sm:$0xff]
    %v287 = vld [vmem:[#allocation5 + $0x6f0] sm:$0xff]
    %v288 = vld [vmem:[#allocation5 + $0x6f8] sm:$0xff]
    %v289 = vld [vmem:[#allocation5 + $0x700] sm:$0xff]
    %v290 = vld [vmem:[#allocation5 + $0x708] sm:$0xff]
    %v291 = vld [vmem:[#allocation5 + $0x710] sm:$0xff]
    %v292 = vld [vmem:[#allocation5 + $0x718] sm:$0xff]
    %v293 = vld [vmem:[#allocation5 + $0x720] sm:$0xff]
    %v294 = vld [vmem:[#allocation5 + $0x728] sm:$0xff]
    %v295 = vld [vmem:[#allocation5 + $0x730] sm:$0xff]
    %v296 = vld [vmem:[#allocation5 + $0x738] sm:$0xff]
    %v297 = vld [vmem:[#allocation5 + $0x740] sm:$0xff]
    %v298 = vld [vmem:[#allocation5 + $0x748] sm:$0xff]
    %v299 = vld [vmem:[#allocation5 + $0x750] sm:$0xff]
    %v300 = vld [vmem:[#allocation5 + $0x758] sm:$0xff]
    %v301 = vld [vmem:[#allocation5 + $0x760] sm:$0xff]
    %v302 = vld [vmem:[#allocation5 + $0x768] sm:$0xff]
    %v303 = vld [vmem:[#allocation5 + $0x770] sm:$0xff]
    %v304 = vld [vmem:[#allocation5 + $0x778] sm:$0xff]
    %v305 = vld [vmem:[#allocation5 + $0x780] sm:$0xff]
    %v306 = vld [vmem:[#allocation5 + $0x788] sm:$0xff]
    %v307 = vld [vmem:[#allocation5 + $0x790] sm:$0xff]
    %v308 = vld [vmem:[#allocation5 + $0x798] sm:$0xff]
    %v309 = vld [vmem:[#allocation5 + $0x7a0] sm:$0xff]
    %v310 = vld [vmem:[#allocation5 + $0x7a8] sm:$0xff]
    %v311 = vld [vmem:[#allocation5 + $0x7b0] sm:$0xff]
    %v312 = vld [vmem:[#allocation5 + $0x7b8] sm:$0xff]
    %v313 = vld [vmem:[#allocation5 + $0x7c0] sm:$0xff]
    %v314 = vld [vmem:[#allocation5 + $0x7c8] sm:$0xff]
    %v315 = vld [vmem:[#allocation5 + $0x7d0] sm:$0xff]
    %v316 = vld [vmem:[#allocation5 + $0x7d8] sm:$0xff]
    %v317 = vld [vmem:[#allocation5 + $0x7e0] sm:$0xff]
    %v318 = vld [vmem:[#allocation5 + $0x7e8] sm:$0xff]
    %v319 = vld [vmem:[#allocation5 + $0x7f0] sm:$0xff]
    %v320 = vld [vmem:[#allocation5 + $0x7f8] sm:$0xff]
    %321 = vmatpush.msra.mxu0 %v125
    %322 = vmatpush.msra.mxu0 %v121
    %323 = vmatpush.msra.mxu0 %v117
    %324 = vmatpush.msra.mxu0 %v113
    %325 = vmatpush.msra.mxu0 %v109
    %326 = vmatpush.msra.mxu0 %v105
    %327 = vmatpush.msra.mxu0 %v101
    %328 = vmatpush.msra.mxu0 %v97
    %329 = vmatpush.msra.mxu0 %v93
    %330 = vmatpush.msra.mxu0 %v89
    %331 = vmatpush.msra.mxu0 %v85
    %332 = vmatpush.msra.mxu0 %v81
    %333 = vmatpush.msra.mxu0 %v77
    %334 = vmatpush.msra.mxu0 %v73
    %335 = vmatpush.msra.mxu0 %v69
    %336 = vmatpush.msra.mxu0 %v65
    %337 = vmatmul.f32.gmra.mxu0 %v61
    %v338 = vpop.f32.mrf.mxu0
    %v339 = vadd.f32 0.0, %v338
    %340 = vdwg.mxu0
    %341 = vmatpush.msra.mxu0 %v189
    %342 = vmatpush.msra.mxu0 %v185
    %343 = vmatpush.msra.mxu0 %v181
    %344 = vmatpush.msra.mxu0 %v177
    %345 = vmatpush.msra.mxu0 %v173
    %346 = vmatpush.msra.mxu0 %v169
    %347 = vmatpush.msra.mxu0 %v165
    %348 = vmatpush.msra.mxu0 %v161
    %349 = vmatpush.msra.mxu0 %v157
    %350 = vmatpush.msra.mxu0 %v153
    %351 = vmatpush.msra.mxu0 %v149
    %352 = vmatpush.msra.mxu0 %v145
    %353 = vmatpush.msra.mxu0 %v141
    %354 = vmatpush.msra.mxu0 %v137
    %355 = vmatpush.msra.mxu0 %v133
    %356 = vmatpush.msra.mxu0 %v129
    %357 = vmatmul.f32.gmra.mxu0 %v62
    %v358 = vpop.f32.mrf.mxu0
    %v359 = vadd.f32 %v339, %v358
    %360 = vdwg.mxu0
    %361 = vmatpush.msra.mxu0 %v253
    %362 = vmatpush.msra.mxu0 %v249
    %363 = vmatpush.msra.mxu0 %v245
    %364 = vmatpush.msra.mxu0 %v241
    %365 = vmatpush.msra.mxu0 %v237
    %366 = vmatpush.msra.mxu0 %v233
    %367 = vmatpush.msra.mxu0 %v229
    %368 = vmatpush.msra.mxu0 %v225
    %369 = vmatpush.msra.mxu0 %v221
    %370 = vmatpush.msra.mxu0 %v217
    %371 = vmatpush.msra.mxu0 %v213
    %372 = vmatpush.msra.mxu0 %v209
    %373 = vmatpush.msra.mxu0 %v205
    %374 = vmatpush.msra.mxu0 %v201
    %375 = vmatpush.msra.mxu0 %v197
    %376 = vmatpush.msra.mxu0 %v193
    %377 = vmatmul.f32.gmra.mxu0 %v63
    %v378 = vpop.f32.mrf.mxu0
    %v379 = vadd.f32 %v359, %v378
    %380 = vdwg.mxu0
    %381 = vmatpush.msra.mxu0 %v317
    %382 = vmatpush.msra.mxu0 %v313
    %383 = vmatpush.msra.mxu0 %v309
    %384 = vmatpush.msra.mxu0 %v305
    %385 = vmatpush.msra.mxu0 %v301
    %386 = vmatpush.msra.mxu0 %v297
    %387 = vmatpush.msra.mxu0 %v293
    %388 = vmatpush.msra.mxu0 %v289
    %389 = vmatpush.msra.mxu0 %v285
    %390 = vmatpush.msra.mxu0 %v281
    %391 = vmatpush.msra.mxu0 %v277
    %392 = vmatpush.msra.mxu0 %v273
    %393 = vmatpush.msra.mxu0 %v269
    %394 = vmatpush.msra.mxu0 %v265
    %395 = vmatpush.msra.mxu0 %v261
    %396 = vmatpush.msra.mxu0 %v257
    %397 = vmatmul.f32.gmra.mxu0 %v64
    %v398 = vpop.f32.mrf.mxu0
    %v399 = vadd.f32 %v379, %v398
    %400 = vdwg.mxu0
    %401 = vmatpush.msra.mxu0 %v126
    %402 = vmatpush.msra.mxu0 %v122
    %403 = vmatpush.msra.mxu0 %v118
    %404 = vmatpush.msra.mxu0 %v114
    %405 = vmatpush.msra.mxu0 %v110
    %406 = vmatpush.msra.mxu0 %v106
    %407 = vmatpush.msra.mxu0 %v102
    %408 = vmatpush.msra.mxu0 %v98
    %409 = vmatpush.msra.mxu0 %v94
    %410 = vmatpush.msra.mxu0 %v90
    %411 = vmatpush.msra.mxu0 %v86
    %412 = vmatpush.msra.mxu0 %v82
    %413 = vmatpush.msra.mxu0 %v78
    %414 = vmatpush.msra.mxu0 %v74
    %415 = vmatpush.msra.mxu0 %v70
    %416 = vmatpush.msra.mxu0 %v66
    %417 = vmatmul.f32.gmra.mxu0 %v61
    %v418 = vpop.f32.mrf.mxu0
    %v419 = vadd.f32 0.0, %v418
    %420 = vdwg.mxu0
    %421 = vmatpush.msra.mxu0 %v190
    %422 = vmatpush.msra.mxu0 %v186
    %423 = vmatpush.msra.mxu0 %v182
    %424 = vmatpush.msra.mxu0 %v178
    %425 = vmatpush.msra.mxu0 %v174
    %426 = vmatpush.msra.mxu0 %v170
    %427 = vmatpush.msra.mxu0 %v166
    %428 = vmatpush.msra.mxu0 %v162
    %429 = vmatpush.msra.mxu0 %v158
    %430 = vmatpush.msra.mxu0 %v154
    %431 = vmatpush.msra.mxu0 %v150
    %432 = vmatpush.msra.mxu0 %v146
    %433 = vmatpush.msra.mxu0 %v142
    %434 = vmatpush.msra.mxu0 %v138
    %435 = vmatpush.msra.mxu0 %v134
    %436 = vmatpush.msra.mxu0 %v130
    %437 = vmatmul.f32.gmra.mxu0 %v62
    %v438 = vpop.f32.mrf.mxu0
    %v439 = vadd.f32 %v419, %v438
    %440 = vdwg.mxu0
    %441 = vmatpush.msra.mxu0 %v254
    %442 = vmatpush.msra.mxu0 %v250
    %443 = vmatpush.msra.mxu0 %v246
    %444 = vmatpush.msra.mxu0 %v242
    %445 = vmatpush.msra.mxu0 %v238
    %446 = vmatpush.msra.mxu0 %v234
    %447 = vmatpush.msra.mxu0 %v230
    %448 = vmatpush.msra.mxu0 %v226
    %449 = vmatpush.msra.mxu0 %v222
    %450 = vmatpush.msra.mxu0 %v218
    %451 = vmatpush.msra.mxu0 %v214
    %452 = vmatpush.msra.mxu0 %v210
    %453 = vmatpush.msra.mxu0 %v206
    %454 = vmatpush.msra.mxu0 %v202
    %455 = vmatpush.msra.mxu0 %v198
    %456 = vmatpush.msra.mxu0 %v194
    %457 = vmatmul.f32.gmra.mxu0 %v63
    %v458 = vpop.f32.mrf.mxu0
    %v459 = vadd.f32 %v439, %v458
    %460 = vdwg.mxu0
    %461 = vmatpush.msra.mxu0 %v318
    %462 = vmatpush.msra.mxu0 %v314
    %463 = vmatpush.msra.mxu0 %v310
    %464 = vmatpush.msra.mxu0 %v306
    %465 = vmatpush.msra.mxu0 %v302
    %466 = vmatpush.msra.mxu0 %v298
    %467 = vmatpush.msra.mxu0 %v294
    %468 = vmatpush.msra.mxu0 %v290
    %469 = vmatpush.msra.mxu0 %v286
    %470 = vmatpush.msra.mxu0 %v282
    %471 = vmatpush.msra.mxu0 %v278
    %472 = vmatpush.msra.mxu0 %v274
    %473 = vmatpush.msra.mxu0 %v270
    %474 = vmatpush.msra.mxu0 %v266
    %475 = vmatpush.msra.mxu0 %v262
    %476 = vmatpush.msra.mxu0 %v258
    %477 = vmatmul.f32.gmra.mxu0 %v64
    %v478 = vpop.f32.mrf.mxu0
    %v479 = vadd.f32 %v459, %v478
    %480 = vdwg.mxu0
    %481 = vmatpush.msra.mxu0 %v127
    %482 = vmatpush.msra.mxu0 %v123
    %483 = vmatpush.msra.mxu0 %v119
    %484 = vmatpush.msra.mxu0 %v115
    %485 = vmatpush.msra.mxu0 %v111
    %486 = vmatpush.msra.mxu0 %v107
    %487 = vmatpush.msra.mxu0 %v103
    %488 = vmatpush.msra.mxu0 %v99
    %489 = vmatpush.msra.mxu0 %v95
    %490 = vmatpush.msra.mxu0 %v91
    %491 = vmatpush.msra.mxu0 %v87
    %492 = vmatpush.msra.mxu0 %v83
    %493 = vmatpush.msra.mxu0 %v79
    %494 = vmatpush.msra.mxu0 %v75
    %495 = vmatpush.msra.mxu0 %v71
    %496 = vmatpush.msra.mxu0 %v67
    %497 = vmatmul.f32.gmra.mxu0 %v61
    %v498 = vpop.f32.mrf.mxu0
    %v499 = vadd.f32 0.0, %v498
    %500 = vdwg.mxu0
    %501 = vmatpush.msra.mxu0 %v191
    %502 = vmatpush.msra.mxu0 %v187
    %503 = vmatpush.msra.mxu0 %v183
    %504 = vmatpush.msra.mxu0 %v179
    %505 = vmatpush.msra.mxu0 %v175
    %506 = vmatpush.msra.mxu0 %v171
    %507 = vmatpush.msra.mxu0 %v167
    %508 = vmatpush.msra.mxu0 %v163
    %509 = vmatpush.msra.mxu0 %v159
    %510 = vmatpush.msra.mxu0 %v155
    %511 = vmatpush.msra.mxu0 %v151
    %512 = vmatpush.msra.mxu0 %v147
    %513 = vmatpush.msra.mxu0 %v143
    %514 = vmatpush.msra.mxu0 %v139
    %515 = vmatpush.msra.mxu0 %v135
    %516 = vmatpush.msra.mxu0 %v131
    %517 = vmatmul.f32.gmra.mxu0 %v62
    %v518 = vpop.f32.mrf.mxu0
    %v519 = vadd.f32 %v499, %v518
    %520 = vdwg.mxu0
    %521 = vmatpush.msra.mxu0 %v255
    %522 = vmatpush.msra.mxu0 %v251
    %523 = vmatpush.msra.mxu0 %v247
    %524 = vmatpush.msra.mxu0 %v243
    %525 = vmatpush.msra.mxu0 %v239
    %526 = vmatpush.msra.mxu0 %v235
    %527 = vmatpush.msra.mxu0 %v231
    %528 = vmatpush.msra.mxu0 %v227
    %529 = vmatpush.msra.mxu0 %v223
    %530 = vmatpush.msra.mxu0 %v219
    %531 = vmatpush.msra.mxu0 %v215
    %532 = vmatpush.msra.mxu0 %v211
    %533 = vmatpush.msra.mxu0 %v207
    %534 = vmatpush.msra.mxu0 %v203
    %535 = vmatpush.msra.mxu0 %v199
    %536 = vmatpush.msra.mxu0 %v195
    %537 = vmatmul.f32.gmra.mxu0 %v63
    %v538 = vpop.f32.mrf.mxu0
    %v539 = vadd.f32 %v519, %v538
    %540 = vdwg.mxu0
    %541 = vmatpush.msra.mxu0 %v319
    %542 = vmatpush.msra.mxu0 %v315
    %543 = vmatpush.msra.mxu0 %v311
    %544 = vmatpush.msra.mxu0 %v307
    %545 = vmatpush.msra.mxu0 %v303
    %546 = vmatpush.msra.mxu0 %v299
    %547 = vmatpush.msra.mxu0 %v295
    %548 = vmatpush.msra.mxu0 %v291
    %549 = vmatpush.msra.mxu0 %v287
    %550 = vmatpush.msra.mxu0 %v283
    %551 = vmatpush.msra.mxu0 %v279
    %552 = vmatpush.msra.mxu0 %v275
    %553 = vmatpush.msra.mxu0 %v271
    %554 = vmatpush.msra.mxu0 %v267
    %555 = vmatpush.msra.mxu0 %v263
    %556 = vmatpush.msra.mxu0 %v259
    %557 = vmatmul.f32.gmra.mxu0 %v64
    %v558 = vpop.f32.mrf.mxu0
    %v559 = vadd.f32 %v539, %v558
    %560 = vdwg.mxu0
    %561 = vmatpush.msra.mxu0 %v128
    %562 = vmatpush.msra.mxu0 %v124
    %563 = vmatpush.msra.mxu0 %v120
    %564 = vmatpush.msra.mxu0 %v116
    %565 = vmatpush.msra.mxu0 %v112
    %566 = vmatpush.msra.mxu0 %v108
    %567 = vmatpush.msra.mxu0 %v104
    %568 = vmatpush.msra.mxu0 %v100
    %569 = vmatpush.msra.mxu0 %v96
    %570 = vmatpush.msra.mxu0 %v92
    %571 = vmatpush.msra.mxu0 %v88
    %572 = vmatpush.msra.mxu0 %v84
    %573 = vmatpush.msra.mxu0 %v80
    %574 = vmatpush.msra.mxu0 %v76
    %575 = vmatpush.msra.mxu0 %v72
    %576 = vmatpush.msra.mxu0 %v68
    %577 = vmatmul.f32.gmra.mxu0 %v61
    %v578 = vpop.f32.mrf.mxu0
    %v579 = vadd.f32 0.0, %v578
    %580 = vdwg.mxu0
    %581 = vmatpush.msra.mxu0 %v192
    %582 = vmatpush.msra.mxu0 %v188
    %583 = vmatpush.msra.mxu0 %v184
    %584 = vmatpush.msra.mxu0 %v180
    %585 = vmatpush.msra.mxu0 %v176
    %586 = vmatpush.msra.mxu0 %v172
    %587 = vmatpush.msra.mxu0 %v168
    %588 = vmatpush.msra.mxu0 %v164
    %589 = vmatpush.msra.mxu0 %v160
    %590 = vmatpush.msra.mxu0 %v156
    %591 = vmatpush.msra.mxu0 %v152
    %592 = vmatpush.msra.mxu0 %v148
    %593 = vmatpush.msra.mxu0 %v144
    %594 = vmatpush.msra.mxu0 %v140
    %595 = vmatpush.msra.mxu0 %v136
    %596 = vmatpush.msra.mxu0 %v132
    %597 = vmatmul.f32.gmra.mxu0 %v62
    %v598 = vpop.f32.mrf.mxu0
    %v599 = vadd.f32 %v579, %v598
    %600 = vdwg.mxu0
    %601 = vmatpush.msra.mxu0 %v256
    %602 = vmatpush.msra.mxu0 %v252
    %603 = vmatpush.msra.mxu0 %v248
    %604 = vmatpush.msra.mxu0 %v244
    %605 = vmatpush.msra.mxu0 %v240
    %606 = vmatpush.msra.mxu0 %v236
    %607 = vmatpush.msra.mxu0 %v232
    %608 = vmatpush.msra.mxu0 %v228
    %609 = vmatpush.msra.mxu0 %v224
    %610 = vmatpush.msra.mxu0 %v220
    %611 = vmatpush.msra.mxu0 %v216
    %612 = vmatpush.msra.mxu0 %v212
    %613 = vmatpush.msra.mxu0 %v208
    %614 = vmatpush.msra.mxu0 %v204
    %615 = vmatpush.msra.mxu0 %v200
    %616 = vmatpush.msra.mxu0 %v196
    %617 = vmatmul.f32.gmra.mxu0 %v63
    %v618 = vpop.f32.mrf.mxu0
    %v619 = vadd.f32 %v599, %v618
    %620 = vdwg.mxu0
    %621 = vmatpush.msra.mxu0 %v320
    %622 = vmatpush.msra.mxu0 %v316
    %623 = vmatpush.msra.mxu0 %v312
    %624 = vmatpush.msra.mxu0 %v308
    %625 = vmatpush.msra.mxu0 %v304
    %626 = vmatpush.msra.mxu0 %v300
    %627 = vmatpush.msra.mxu0 %v296
    %628 = vmatpush.msra.mxu0 %v292
    %629 = vmatpush.msra.mxu0 %v288
    %630 = vmatpush.msra.mxu0 %v284
    %631 = vmatpush.msra.mxu0 %v280
    %632 = vmatpush.msra.mxu0 %v276
    %633 = vmatpush.msra.mxu0 %v272
    %634 = vmatpush.msra.mxu0 %v268
    %635 = vmatpush.msra.mxu0 %v264
    %636 = vmatpush.msra.mxu0 %v260
    %637 = vmatmul.f32.gmra.mxu0 %v64
    %v638 = vpop.f32.mrf.mxu0
    %v639 = vadd.f32 %v619, %v638
    %640 = vdwg.mxu0
    %641 = vst [vmem:[#allocation8] sm:$0xff] %v399
    %642 = vst [vmem:[#allocation8 + $0x8] sm:$0xff] %v479
    %643 = vst [vmem:[#allocation8 + $0x10] sm:$0xff] %v559
    %644 = vst [vmem:[#allocation8 + $0x18] sm:$0xff] %v639
    %p645 = scmp.eq.s32.totalorder 0, 0
    // Predicated region
    $region26: #{tpu_custom_call.1} parent=1 // pred_check
      %p646 = pneg %p645
    $region27: #{tpu_custom_call.1} parent=1 // pred_check_branch
      %648 = sbr.rel (%p646) target = $region29
    $region28: #{tpu_custom_call.1} parent=1 // pred_region
      %649 = vst [vmem:[#allocation9] sm:$0xff] 0.0
    $region29: #{tpu_custom_call.1} parent=1 // pred_fallthru
      _
    %v650 = vld [vmem:[#allocation9] ss:$2 sm:$0xf]
    %v651 = vrot.slane %v399, 4
    %v652 = vadd.f32 %v399, %v651
    %v653 = vrot.slane %v652, 2
    %v654 = vadd.f32 %v652, %v653
    %v655 = vrot.slane %v654, 1
    %v656 = vadd.f32 %v654, %v655
    %v657 = vrot.slane %v479, 4
    %v658 = vadd.f32 %v479, %v657
    %v659 = vrot.slane %v658, 2
    %v660 = vadd.f32 %v658, %v659
    %v661 = vrot.slane %v660, 1
    %v662 = vadd.f32 %v660, %v661
    %v663 = vrot.slane %v559, 4
    %v664 = vadd.f32 %v559, %v663
    %v665 = vrot.slane %v664, 2
    %v666 = vadd.f32 %v664, %v665
    %v667 = vrot.slane %v666, 1
    %v668 = vadd.f32 %v666, %v667
    %v669 = vrot.slane %v639, 4
    %v670 = vadd.f32 %v639, %v669
    %v671 = vrot.slane %v670, 2
    %v672 = vadd.f32 %v670, %v671
    %v673 = vrot.slane %v672, 1
    %v674 = vadd.f32 %v672, %v673
    %v679 = vrot.slane %v662, 7
    %v680 = vrot.slane %v668, 6
    %v681 = vrot.slane %v674, 5
    %vm682 = vcmask 1040384
    %v683 = vsel %vm682, %v656, %v679
    %vm684 = vcmask 1042434
    %v685 = vsel %vm684, %v680, %v681
    %vm686 = vcmask 1041408
    %v687 = vsel %vm686, %v683, %v685
    %v689 = vadd.f32 %v650, %v687
    %v690 = vlaneseq
    %vm691 = vcmp.ge.s32.totalorder %v690, 0
    %vm692 = vcmp.lt.s32.totalorder %v690, 512
    %vm693 = vmand %vm691, %vm692
    %694 = vst.msk [vmem:[#allocation9] ss:$2 sm:$0xf] %vm693, %v689
    %s695 = scalar_lea.vmem [#allocation9], 1
    %v696 = vld [vmem:[%s695] ss:$2 sm:$0xf]
    %v697 = vmul.f32 %v399, %v399
    %v698 = vmul.f32 %v479, %v479
    %v699 = vmul.f32 %v559, %v559
    %v700 = vmul.f32 %v639, %v639
    %v701 = vrot.slane %v697, 4
    %v702 = vadd.f32 %v697, %v701
    %v703 = vrot.slane %v702, 2
    %v704 = vadd.f32 %v702, %v703
    %v705 = vrot.slane %v704, 1
    %v706 = vadd.f32 %v704, %v705
    %v707 = vrot.slane %v698, 4
    %v708 = vadd.f32 %v698, %v707
    %v709 = vrot.slane %v708, 2
    %v710 = vadd.f32 %v708, %v709
    %v711 = vrot.slane %v710, 1
    %v712 = vadd.f32 %v710, %v711
    %v713 = vrot.slane %v699, 4
    %v714 = vadd.f32 %v699, %v713
    %v715 = vrot.slane %v714, 2
    %v716 = vadd.f32 %v714, %v715
    %v717 = vrot.slane %v716, 1
    %v718 = vadd.f32 %v716, %v717
    %v719 = vrot.slane %v700, 4
    %v720 = vadd.f32 %v700, %v719
    %v721 = vrot.slane %v720, 2
    %v722 = vadd.f32 %v720, %v721
    %v723 = vrot.slane %v722, 1
    %v724 = vadd.f32 %v722, %v723
    %v729 = vrot.slane %v712, 7
    %v730 = vrot.slane %v718, 6
    %v731 = vrot.slane %v724, 5
    %v732 = vsel %vm682, %v706, %v729
    %v733 = vsel %vm684, %v730, %v731
    %v734 = vsel %vm686, %v732, %v733
    %v736 = vadd.f32 %v696, %v734
    %737 = vst.msk [vmem:[%s695] ss:$2 sm:$0xf] %vm693, %v736
    // Predicated region
    $region30: #{tpu_custom_call.1} parent=1 // pred_check
      %p738 = pneg %p645
    $region31: #{tpu_custom_call.1} parent=1 // pred_check_branch
      %740 = sbr.rel (%p738) target = $region33
    $region32: #{tpu_custom_call.1} parent=1 // pred_region
      %v741 = vld [vmem:[#allocation9] ss:$2 sm:$0xf]
      %v742 = vmul.f32 %v741, 0.125
      %v743 = vld [vmem:[%s695] ss:$2 sm:$0xf]
      %v744 = vmul.f32 %v743, 0.125
      %v745 = vmul.f32 %v742, %v742
      %v746 = vsub.f32 %v744, %v745
      %v747 = vmax.f32 %v746, 0.0
      %v748 = vadd.f32 %v747, 1e-05
      %v749 = vrsqrt.pop %v748
      %v750 = vmul.f32 %v749, %v748
      %v751 = vmul.f32 %v750, %v749
      %v752 = vmul.f32 0.5, %v751
      %v753 = vsub.f32 1.5, %v752
      %v754 = vmul.f32 %v749, %v753
      %vm755 = vweird.f32 %v748
      %vm756 = vweird.f32 %v749
      %vm757 = vmor %vm755, %vm756
      %v758 = vsel %vm757, %v749, %v754
      %v759 = vld [vmem:[#allocation7] ss:$2 sm:$0xf]
      %v760 = vmul.f32 %v759, %v758
      %s761 = scalar_lea.vmem [#allocation7], 1
      %v762 = vld [vmem:[%s761] ss:$2 sm:$0xf]
      %v763 = vmul.f32 %v742, %v760
      %v764 = vsub.f32 %v762, %v763
      %765 = vst.msk [vmem:[#allocation9] ss:$2 sm:$0xf] %vm693, %v760
      %766 = vst.msk [vmem:[%s695] ss:$2 sm:$0xf] %vm693, %v764
    $region33: #{tpu_custom_call.1} parent=1 // pred_fallthru
      _
    // Predicated region
    $region34: #{tpu_custom_call.1} parent=1 // pred_check
      _
    $region35: #{tpu_custom_call.1} parent=1 // pred_check_branch
      %768 = sbr.rel (0) target = $region37
    $region36: #{tpu_custom_call.1} parent=1 // pred_region
      %770 = vsyncadd [#allocation4], 0
      %s772 = sshll.u32 [#allocation8], 4
      %s773 = int_to_ptr.vmem [resolvable:$true] %s772
      %s774 = sshll.u32 %s3, 4
      %s775 = int_to_ptr.hbm [resolvable:$true] %s774
      %777 = dma.vmem_to_hbm [thread:$0]  %s773, 512, %s775, [#allocation4]
    $region37: #{tpu_custom_call.1} parent=1 // pred_fallthru
      _
    // Predicated region
    $region38: #{tpu_custom_call.1} parent=1 // pred_check
      _
    $region39: #{tpu_custom_call.1} parent=1 // pred_check_branch
      %779 = sbr.rel (0) target = $region41
    $region40: #{tpu_custom_call.1} parent=1 // pred_region
      %781 = vsyncadd [#allocation10], 0
      %s783 = sshll.u32 [#allocation9], 4
      %s784 = int_to_ptr.vmem [resolvable:$true] %s783
      %s785 = sshll.u32 %s4, 4
      %s786 = int_to_ptr.hbm [resolvable:$true] %s785
      %788 = dma.vmem_to_hbm [thread:$0]  %s784, 128, %s786, [#allocation10]
    $region41: #{tpu_custom_call.1} parent=1 // pred_fallthru
      _
    // Predicated region
    $region42: #{tpu_custom_call.1} parent=1 // pred_check
      _
    $region43: #{tpu_custom_call.1} parent=1 // pred_check_branch
      %790 = sbr.rel (0) target = $region45
    $region44: #{tpu_custom_call.1} parent=1 // pred_region
      %792 = dma.done [#allocation4], 512
    $region45: #{tpu_custom_call.1} parent=1 // pred_fallthru
      _
    // Predicated region
    $region46: #{tpu_custom_call.1} parent=1 // pred_check
      _
    $region47: #{tpu_custom_call.1} parent=1 // pred_check_branch
      %794 = sbr.rel (0) target = $region49
    $region48: #{tpu_custom_call.1} parent=1 // pred_region
      %796 = dma.done [#allocation10], 128
    $region49: #{tpu_custom_call.1} parent=1 // pred_fallthru
      _
    %797 = vsyncpa [#allocation3], 1
    %798 = vsyncpa [#allocation6], 1
    %799 = vsyncpa [#allocation4], 1
    %800 = vsyncpa [#allocation10], 1

</llo_original>
